<compile_context>
chip_gen: v5e
topology: v5e:2x2
jax: 0.10.0
libtpu: 0.0.40
codegen_flags: <defaults>
</compile_context>

<pallas_src>
import math

import numpy as np
import jax
import jax.numpy as jnp
from jax.experimental import pallas as pl
from jax.experimental.pallas import tpu as pltpu

_MAX_ROW_BLOCK = 128          # sublane rows per block (multiple of 16)
_LANE_MULT = 128              # lane quantum
_MAX_BLOCK_ELEMS = 512 * 1024 # ~2 MiB f32 per pred block
_NEG_PAD = -1e30              # sigmoid(-1e30) == 0 exactly in f32


# ----------------------------------------------------------------------------------
# glue: nearest-neighbour resize matching F.interpolate(mode='nearest') on NCHW
# (src index = floor(dst * in / out)); shapes are static so this is a cheap gather.
# ----------------------------------------------------------------------------------
def _nearest_resize_nchw(x, out_h, out_w):
    _, _, in_h, in_w = x.shape
    if (in_h, in_w) == (out_h, out_w):
        return x
    rows = (np.arange(out_h) * in_h // out_h).astype(np.int32)
    cols = (np.arange(out_w) * in_w // out_w).astype(np.int32)
    return x[:, :, rows[:, None], cols[None, :]]


def _largest_divisor(n, cap, mult):
    """Largest d with n % d == 0, d % mult == 0, d <= cap (n a multiple of mult)."""
    best = mult
    for d in range(mult, min(n, cap) + 1, mult):
        if n % d == 0:
            best = d
    return best


# ----------------------------------------------------------------------------------
# kernel: per-row partial sums of intersection and union, accumulated over the
# HW grid axis in VMEM scratch and written out on the last HW step.
# ----------------------------------------------------------------------------------
def _dice_partial_kernel(pred_ref, tgt_ref, inter_ref, union_ref, inter_acc, union_acc):
    k = pl.program_id(1)

    @pl.when(k == 0)
    def _():
        inter_acc[...] = jnp.zeros_like(inter_acc)
        union_acc[...] = jnp.zeros_like(union_acc)

    x = pred_ref[...].astype(jnp.float32)
    # sigmoid(x) == 0.5 * (tanh(0.5*x) + 1): single EUP push per element.
    p = 0.5 * (jnp.tanh(0.5 * x) + 1.0)
    t = tgt_ref[...].astype(jnp.float32)

    inter_acc[...] += jnp.sum(p * t, axis=1, keepdims=True)
    # sum(p + t) instead of sum(p) + sum(t): one fewer cross-lane reduce per tile.
    union_acc[...] += jnp.sum(p + t, axis=1, keepdims=True)

    @pl.when(k == pl.num_programs(1) - 1)
    def _():
        inter_ref[...] = inter_acc[...]
        union_ref[...] = union_acc[...]


# ----------------------------------------------------------------------------------
# wrapper
# ----------------------------------------------------------------------------------
def dice_loss(pred, target, eps=1e-7):
    """pred: [B,1,H,W] logits, target: [B,1,h,w] mask -> scalar dice loss."""
    assert pred.ndim == 4 and pred.shape[1] == 1, "expected [B,1,H,W] logits"
    b, _, h, w = pred.shape
    if pred.shape != target.shape:                       # PyTorch branch
        target = _nearest_resize_nchw(target, h, w)

    hw = h * w

    # --- layout selection (all static Python) ------------------------------------
    # G sub-rows per batch so B*G is a multiple of 16 (full sublane occupancy for
    # both the f32 pred and the bf16 target).
    g = 16 // math.gcd(b, 16)
    # Pack more sub-rows while the lane axis stays wide, so big single-image losses
    # still expose >1 "parallel" row block (v7x: 2 TensorCores).
    while b * g < 64 and (hw + 2 * g - 1) // (2 * g) >= 2048:
        g *= 2

    total_rows = b * g
    row_cap = min(_MAX_ROW_BLOCK, total_rows if total_rows < 32 else total_rows // 2)
    rows_blk = _largest_divisor(total_rows, row_cap, 16)
    n_row_blocks = total_rows // rows_blk

    cols0 = -(-hw // g)                                  # ceil(hw / g)
    lane_budget = max(_LANE_MULT,
                      (_MAX_BLOCK_ELEMS // rows_blk) // _LANE_MULT * _LANE_MULT)
    if cols0 <= lane_budget:
        tile_hw = cols0                                  # full lane extent
        cols = cols0
    else:
        tile_hw = lane_budget                            # multiple of 128
        cols = -(-cols0 // tile_hw) * tile_hw
    n_hw_blocks = cols // tile_hw

    pad = cols * g - hw                                  # neutral padding per batch
    pred2 = pred.reshape(b, hw)
    # TODO(synk): bf16 mask is exact only for 0/1 masks; keep f32 for soft masks.
    tgt2 = target.reshape(b, hw).astype(jnp.bfloat16)
    if pad:
        pred2 = jnp.pad(pred2, ((0, 0), (0, pad)),
                        constant_values=jnp.asarray(_NEG_PAD, pred2.dtype))
        tgt2 = jnp.pad(tgt2, ((0, 0), (0, pad)), constant_values=0)
    pred2 = pred2.reshape(total_rows, cols)
    tgt2 = tgt2.reshape(total_rows, cols)

    # --- fused partial-sum kernel -------------------------------------------------
    grid_spec = pltpu.PrefetchScalarGridSpec(
        num_scalar_prefetch=0,
        grid=(n_row_blocks, n_hw_blocks),
        in_specs=[pl.BlockSpec((rows_blk, tile_hw), lambda i, k: (i, k)),
                  pl.BlockSpec((rows_blk, tile_hw), lambda i, k: (i, k))],
        out_specs=[pl.BlockSpec((rows_blk, 1), lambda i, k: (i, 0)),
                   pl.BlockSpec((rows_blk, 1), lambda i, k: (i, 0))],
        scratch_shapes=[pltpu.VMEM((rows_blk, 1), jnp.float32),
                        pltpu.VMEM((rows_blk, 1), jnp.float32)],
    )
    inter_rows, union_rows = pl.pallas_call(
        _dice_partial_kernel,
        out_shape=(jax.ShapeDtypeStruct((total_rows, 1), jnp.float32),
                   jax.ShapeDtypeStruct((total_rows, 1), jnp.float32)),
        grid_spec=grid_spec,
        compiler_params=pltpu.CompilerParams(
            dimension_semantics=("parallel", "arbitrary"),
            vmem_limit_bytes=32 * 1024 * 1024),
    )(pred2, tgt2)

    # --- tiny epilogue (dice ratio + mean) left to XLA ----------------------------
    inter = inter_rows.reshape(b, g).sum(axis=1)
    union = union_rows.reshape(b, g).sum(axis=1)
    dice = (2.0 * inter + eps) / (union + eps)
    return 1.0 - jnp.mean(dice)


# ----------------------------------------------------------------------------------
if __name__ == "__main__":
    key = jax.random.PRNGKey(0)
    k1, k2, k3 = jax.random.split(key, 3)
    B, H, W = 2, 16, 16

    pred = jax.random.normal(k1, (B, 1, H, W), jnp.float32)
    target = (jax.random.uniform(k2, (B, 1, H, W)) > 0.5).astype(jnp.float32)

    loss = jax.jit(dice_loss)(pred, target)
    jax.block_until_ready(loss)

    # pure-JAX reference of the PyTorch module
    def ref_dice(pred, target, eps=1e-7):
        p = jax.nn.sigmoid(pred).reshape(pred.shape[0], -1)
        t = target.reshape(target.shape[0], -1)
        inter = (p * t).sum(axis=1)
        union = p.sum(axis=1) + t.sum(axis=1)
        dice = (2.0 * inter + eps) / (union + eps)
        return 1.0 - dice.mean()

    np.testing.assert_allclose(np.asarray(loss), np.asarray(ref_dice(pred, target)),
                               rtol=1e-5, atol=1e-5)

    # exercise the shape-mismatch branch: half-resolution target, nearest-upsampled
    target_small = (jax.random.uniform(k3, (B, 1, H // 2, W // 2)) > 0.5).astype(jnp.float32)
    loss2 = dice_loss(pred, target_small)
    jax.block_until_ready(loss2)
    np.testing.assert_allclose(
        np.asarray(loss2),
        np.asarray(ref_dice(pred, _nearest_resize_nchw(target_small, H, W))),
        rtol=1e-5, atol=1e-5)

    print("KERNEL_OK")
</pallas_src>

<mosaic_0001>
module attributes {stable_mosaic.version = 11 : i64} {
  func.func @_dice_partial_kernel(%arg0: i32, %arg1: i32, %arg2: memref<16x32xf32, #tpu.memory_space<vmem>>, %arg3: memref<16x32xbf16, #tpu.memory_space<vmem>>, %arg4: memref<16x1xf32, #tpu.memory_space<vmem>>, %arg5: memref<16x1xf32, #tpu.memory_space<vmem>>, %arg6: memref<16x1xf32, #tpu.memory_space<vmem>>, %arg7: memref<16x1xf32, #tpu.memory_space<vmem>>) attributes {dimension_semantics = [#tpu.dimension_semantics<parallel>, #tpu.dimension_semantics<arbitrary>], iteration_bounds = array<i64: 1, 1>, scalar_prefetch = 0 : i64, scratch_operands = 2 : i64, tpu.core_type = #tpu.core_type<tc>, window_params = [{transform_indices = @transform_0, window_bounds = array<i64: 16, 32>}, {transform_indices = @transform_1, window_bounds = array<i64: 16, 32>}, {transform_indices = @transform_2, window_bounds = array<i64: 16, 1>}, {transform_indices = @transform_3, window_bounds = array<i64: 16, 1>}]} {
    %c0_i32 = arith.constant 0 : i32
    %0 = arith.cmpi eq, %arg1, %c0_i32 : i32
    %1 = arith.extui %0 : i1 to i32
    %c0_i32_0 = arith.constant 0 : i32
    %2 = arith.cmpi ne, %1, %c0_i32_0 : i32
    scf.if %2 {
      %cst_18 = arith.constant 0.000000e+00 : f32
      %28 = vector.broadcast %cst_18 : f32 to vector<16x1xf32>
      %c0_19 = arith.constant 0 : index
      %c0_20 = arith.constant 0 : index
      %29 = vector.load %arg6[%c0_19, %c0_20] : memref<16x1xf32, #tpu.memory_space<vmem>>, vector<16x1xf32>
      tpu.vector_store %arg6[%c0_19, %c0_20], %28 {strides = array<i32>} : memref<16x1xf32, #tpu.memory_space<vmem>>, vector<16x1xf32>,
      %cst_21 = arith.constant 0.000000e+00 : f32
      %30 = vector.broadcast %cst_21 : f32 to vector<16x1xf32>
      %c0_22 = arith.constant 0 : index
      %c0_23 = arith.constant 0 : index
      %31 = vector.load %arg7[%c0_22, %c0_23] : memref<16x1xf32, #tpu.memory_space<vmem>>, vector<16x1xf32>
      tpu.vector_store %arg7[%c0_22, %c0_23], %30 {strides = array<i32>} : memref<16x1xf32, #tpu.memory_space<vmem>>, vector<16x1xf32>,
    } else {
    }
    %c0 = arith.constant 0 : index
    %c0_1 = arith.constant 0 : index
    %3 = vector.load %arg2[%c0, %c0_1] : memref<16x32xf32, #tpu.memory_space<vmem>>, vector<16x32xf32>
    %cst = arith.constant 5.000000e-01 : f32
    %4 = vector.broadcast %cst : f32 to vector<16x32xf32>
    %5 = arith.mulf %4, %3 : vector<16x32xf32>
    %6 = math.tanh %5 : vector<16x32xf32>
    %cst_2 = arith.constant 1.000000e+00 : f32
    %7 = vector.broadcast %cst_2 : f32 to vector<16x32xf32>
    %8 = arith.addf %6, %7 : vector<16x32xf32>
    %cst_3 = arith.constant 5.000000e-01 : f32
    %9 = vector.broadcast %cst_3 : f32 to vector<16x32xf32>
    %10 = arith.mulf %9, %8 : vector<16x32xf32>
    %c0_4 = arith.constant 0 : index
    %c0_5 = arith.constant 0 : index
    %11 = vector.load %arg3[%c0_4, %c0_5] : memref<16x32xbf16, #tpu.memory_space<vmem>>, vector<16x32xbf16>
    %12 = arith.extf %11 : vector<16x32xbf16> to vector<16x32xf32>
    %c0_6 = arith.constant 0 : index
    %c0_7 = arith.constant 0 : index
    %13 = vector.load %arg6[%c0_6, %c0_7] : memref<16x1xf32, #tpu.memory_space<vmem>>, vector<16x1xf32>
    %14 = arith.mulf %10, %12 : vector<16x32xf32>
    %cst_8 = arith.constant dense<0.000000e+00> : vector<16xf32>
    %15 = vector.multi_reduction <add>, %14, %cst_8 [1] : vector<16x32xf32> to vector<16xf32>
    %16 = vector.shape_cast %15 : vector<16xf32> to vector<16x1xf32>
    %17 = arith.addf %13, %16 : vector<16x1xf32>
    %c0_9 = arith.constant 0 : index
    %c0_10 = arith.constant 0 : index
    %18 = vector.load %arg6[%c0_9, %c0_10] : memref<16x1xf32, #tpu.memory_space<vmem>>, vector<16x1xf32>
    tpu.vector_store %arg6[%c0_9, %c0_10], %17 {strides = array<i32>} : memref<16x1xf32, #tpu.memory_space<vmem>>, vector<16x1xf32>,
    %c0_11 = arith.constant 0 : index
    %c0_12 = arith.constant 0 : index
    %19 = vector.load %arg7[%c0_11, %c0_12] : memref<16x1xf32, #tpu.memory_space<vmem>>, vector<16x1xf32>
    %20 = arith.addf %10, %12 : vector<16x32xf32>
    %cst_13 = arith.constant dense<0.000000e+00> : vector<16xf32>
    %21 = vector.multi_reduction <add>, %20, %cst_13 [1] : vector<16x32xf32> to vector<16xf32>
    %22 = vector.shape_cast %21 : vector<16xf32> to vector<16x1xf32>
    %23 = arith.addf %19, %22 : vector<16x1xf32>
    %c0_14 = arith.constant 0 : index
    %c0_15 = arith.constant 0 : index
    %24 = vector.load %arg7[%c0_14, %c0_15] : memref<16x1xf32, #tpu.memory_space<vmem>>, vector<16x1xf32>
    tpu.vector_store %arg7[%c0_14, %c0_15], %23 {strides = array<i32>} : memref<16x1xf32, #tpu.memory_space<vmem>>, vector<16x1xf32>,
    %c0_i32_16 = arith.constant 0 : i32
    %25 = arith.cmpi eq, %arg1, %c0_i32_16 : i32
    %26 = arith.extui %25 : i1 to i32
    %c0_i32_17 = arith.constant 0 : i32
    %27 = arith.cmpi ne, %26, %c0_i32_17 : i32
    scf.if %27 {
      %c0_18 = arith.constant 0 : index
      %c0_19 = arith.constant 0 : index
      %28 = vector.load %arg6[%c0_18, %c0_19] : memref<16x1xf32, #tpu.memory_space<vmem>>, vector<16x1xf32>
      %c0_20 = arith.constant 0 : index
      %c0_21 = arith.constant 0 : index
      %29 = vector.load %arg4[%c0_20, %c0_21] : memref<16x1xf32, #tpu.memory_space<vmem>>, vector<16x1xf32>
      tpu.vector_store %arg4[%c0_20, %c0_21], %28 {strides = array<i32>} : memref<16x1xf32, #tpu.memory_space<vmem>>, vector<16x1xf32>,
      %c0_22 = arith.constant 0 : index
      %c0_23 = arith.constant 0 : index
      %30 = vector.load %arg7[%c0_22, %c0_23] : memref<16x1xf32, #tpu.memory_space<vmem>>, vector<16x1xf32>
      %c0_24 = arith.constant 0 : index
      %c0_25 = arith.constant 0 : index
      %31 = vector.load %arg5[%c0_24, %c0_25] : memref<16x1xf32, #tpu.memory_space<vmem>>, vector<16x1xf32>
      tpu.vector_store %arg5[%c0_24, %c0_25], %30 {strides = array<i32>} : memref<16x1xf32, #tpu.memory_space<vmem>>, vector<16x1xf32>,
    } else {
    }
    return
  }
  func.func @transform_0(%arg0: i32, %arg1: i32) -> (i32, i32) {
    %c0_i32 = arith.constant 0 : i32
    return %arg0, %arg1 : i32, i32
  }
  func.func @transform_1(%arg0: i32, %arg1: i32) -> (i32, i32) {
    %c0_i32 = arith.constant 0 : i32
    return %arg0, %arg1 : i32, i32
  }
  func.func @transform_2(%arg0: i32, %arg1: i32) -> (i32, i32) {
    %c0_i32 = arith.constant 0 : i32
    %c0_i32_0 = arith.constant 0 : i32
    return %arg0, %c0_i32 : i32, i32
  }
  func.func @transform_3(%arg0: i32, %arg1: i32) -> (i32, i32) {
    %c0_i32 = arith.constant 0 : i32
    %c0_i32_0 = arith.constant 0 : i32
    return %arg0, %c0_i32 : i32, i32
  }
}

</mosaic_0001>

<llo_original>
// kernel: dice_loss.1
$region0: #{dice_loss.1}
  #allocation0 [shape = 'u32[]', space=smem, size = 0x4, offset = 0x4, fixed_abs, tag = 'smem constant byte address 0x4 - core index']
  #allocation1 [shape = 'u32[72,128]{1,0:T(1,128)}', space=vmem, size = 0x9000, scoped, tag = 'internal scratch']
  #allocation2 [shape = 'f32[16,1]{1,0:T(8,128)}', space=vmem, size = 0x2000, scoped, tag = 'scratch operand']
  #allocation3 [shape = 'f32[16,1]{1,0:T(8,128)}', space=vmem, size = 0x2000, scoped, tag = 'scratch operand']
  %s0 = inlined_call_operand.vmem [shape: f32[16,32], index: 0, kind: input, shape index: {}]
  %s1 = inlined_call_operand.vmem [shape: bf16[16,32], index: 1, kind: input, shape index: {}]
  %s2 = inlined_call_operand.vmem [shape: f32[16,1], index: 2, kind: output, shape index: {0}]
  %s3 = inlined_call_operand.vmem [shape: f32[16,1], index: 3, kind: output, shape index: {1}]
  %4 = xla_tuple %s2, %s3
  %s5 = sld [smem:[#allocation0]]
  $region34: #{dice_loss.1} parent=0
    _
  %s7 = ssub.s32 1, %s5
  %s8 = scalar_select 0, %s7, %s5
  // Predicated region
  $region2: #{dice_loss.1} parent=0 // pred_check
    _
  $region3: #{dice_loss.1} parent=0 // pred_check_branch
    %10 = sbr.rel (0) target = $region5
  $region4: #{dice_loss.1} parent=0 // pred_region
    _
  $region5: #{dice_loss.1} parent=0 // pred_fallthru
    _
  // Predicated region
  $region6: #{dice_loss.1} parent=0 // pred_check
    _
  $region7: #{dice_loss.1} parent=0 // pred_check_branch
    %12 = sbr.rel (0) target = $region9
  $region8: #{dice_loss.1} parent=0 // pred_region
    _
  $region9: #{dice_loss.1} parent=0 // pred_fallthru
    _
  %p13 = scmp.eq.s32.totalorder 0, 0
  // Predicated region
  $region10: #{dice_loss.1} parent=0 // pred_check
    %p14 = pneg %p13
  $region11: #{dice_loss.1} parent=0 // pred_check_branch
    %16 = sbr.rel (%p14) target = $region13
  $region12: #{dice_loss.1} parent=0 // pred_region
    %vm17 = vcmask 7168
    %18 = vst.msk [vmem:[#allocation2] sm:$0xff] %vm17, 0.0
    %19 = vst.msk [vmem:[#allocation2 + $0x8] sm:$0xff] %vm17, 0.0
    %20 = vst.msk [vmem:[#allocation3] sm:$0xff] %vm17, 0.0
    %21 = vst.msk [vmem:[#allocation3 + $0x8] sm:$0xff] %vm17, 0.0
  $region13: #{dice_loss.1} parent=0 // pred_fallthru
    _
  %v22 = vld [vmem:[%s0] sm:$0xff]
  %v23 = vld [vmem:[%s0 + $0x8] sm:$0xff]
  %v24 = vmul.f32 %v22, 0.5
  %v25 = vmul.f32 %v23, 0.5
  %v26 = vtanh.pop %v24
  %v27 = vtanh.pop %v25
  %v28 = vadd.f32 %v26, 1.0
  %v29 = vadd.f32 %v27, 1.0
  %v30 = vmul.f32 %v28, 0.5
  %v31 = vmul.f32 %v29, 0.5
  %v32 = vld [vmem:[%s1] sm:$0xf]
  %v33 = vld [vmem:[%s1 + $0x4] sm:$0xf]
  %v34 = vunpack.c.l.bf16 %v32
  %v35 = vunpack.c.l.bf16 %v33
  %v36 = vld [vmem:[#allocation2] sm:$0xff]
  %v37 = vld [vmem:[#allocation2 + $0x8] sm:$0xff]
  %v38 = vmul.f32 %v30, %v34
  %v39 = vmul.f32 %v31, %v35
  %vm40 = vcmask 261120
  %v41 = vsel %vm40, %v38, 0.0
  %42 = vadd.xlane.f32.xlu0 %v41
  %v43 = vpop.xlane.xlu0 %42
  %v44 = vsel %vm40, %v39, 0.0
  %45 = vadd.xlane.f32.xlu0 %v44
  %v46 = vpop.xlane.xlu0 %45
  %v47 = vadd.f32 %v36, %v43
  %v48 = vadd.f32 %v37, %v46
  %vm49 = vcmask 7168
  %50 = vst.msk [vmem:[#allocation2] sm:$0xff] %vm49, %v47
  %51 = vst.msk [vmem:[#allocation2 + $0x8] sm:$0xff] %vm49, %v48
  %v52 = vld [vmem:[#allocation3] sm:$0xff]
  %v53 = vld [vmem:[#allocation3 + $0x8] sm:$0xff]
  %v54 = vadd.f32 %v30, %v34
  %v55 = vadd.f32 %v31, %v35
  %v56 = vsel %vm40, %v54, 0.0
  %57 = vadd.xlane.f32.xlu0 %v56
  %v58 = vpop.xlane.xlu0 %57
  %v59 = vsel %vm40, %v55, 0.0
  %60 = vadd.xlane.f32.xlu0 %v59
  %v61 = vpop.xlane.xlu0 %60
  %v62 = vadd.f32 %v52, %v58
  %v63 = vadd.f32 %v53, %v61
  %64 = vst.msk [vmem:[#allocation3] sm:$0xff] %vm49, %v62
  %65 = vst.msk [vmem:[#allocation3 + $0x8] sm:$0xff] %vm49, %v63
  // Predicated region
  $region14: #{dice_loss.1} parent=0 // pred_check
    %p66 = pneg %p13
  $region15: #{dice_loss.1} parent=0 // pred_check_branch
    %68 = sbr.rel (%p66) target = $region17
  $region16: #{dice_loss.1} parent=0 // pred_region
    %v69 = vld [vmem:[#allocation2] sm:$0xff]
    %v70 = vld [vmem:[#allocation2 + $0x8] sm:$0xff]
    %71 = vst.msk [vmem:[%s2] sm:$0xff] %vm49, %v69
    %72 = vst.msk [vmem:[%s2 + $0x8] sm:$0xff] %vm49, %v70
    %v73 = vld [vmem:[#allocation3] sm:$0xff]
    %v74 = vld [vmem:[#allocation3 + $0x8] sm:$0xff]
    %75 = vst.msk [vmem:[%s3] sm:$0xff] %vm49, %v73
    %76 = vst.msk [vmem:[%s3 + $0x8] sm:$0xff] %vm49, %v74
  $region17: #{dice_loss.1} parent=0 // pred_fallthru
    _
  // Predicated region
  $region18: #{dice_loss.1} parent=0 // pred_check
    _
  $region19: #{dice_loss.1} parent=0 // pred_check_branch
    %78 = sbr.rel (0) target = $region21
  $region20: #{dice_loss.1} parent=0 // pred_region
    _
  $region21: #{dice_loss.1} parent=0 // pred_fallthru
    _
  // Predicated region
  $region22: #{dice_loss.1} parent=0 // pred_check
    _
  $region23: #{dice_loss.1} parent=0 // pred_check_branch
    %80 = sbr.rel (0) target = $region25
  $region24: #{dice_loss.1} parent=0 // pred_region
    _
  $region25: #{dice_loss.1} parent=0 // pred_fallthru
    _
  // Predicated region
  $region26: #{dice_loss.1} parent=0 // pred_check
    _
  $region27: #{dice_loss.1} parent=0 // pred_check_branch
    %82 = sbr.rel (0) target = $region29
  $region28: #{dice_loss.1} parent=0 // pred_region
    _
  $region29: #{dice_loss.1} parent=0 // pred_fallthru
    _
  // Predicated region
  $region30: #{dice_loss.1} parent=0 // pred_check
    _
  $region31: #{dice_loss.1} parent=0 // pred_check_branch
    %84 = sbr.rel (0) target = $region33
  $region32: #{dice_loss.1} parent=0 // pred_region
    _
  $region33: #{dice_loss.1} parent=0 // pred_fallthru
    _

</llo_original>
